<compile_context>
chip_gen: v6e
topology: v6e:2x2x1
jax: 0.10.0
libtpu: 0.0.40
codegen_flags: <defaults>
</compile_context>

<pallas_src>
import math

import jax
import jax.numpy as jnp
from jax.experimental import pallas as pl
from jax.experimental.pallas import tpu as pltpu


def _dot_product2_kernel(x_ref, w_ref, o_ref):
    x = x_ref[...]
    w = w_ref[...]
    tm, lane_w = x.shape
    ws = w.shape[0]
    if ws == tm or ws == 1:
        # Direct multiply, or (1, W) -> (tm, W) broadcast multiply.
        o_ref[...] = (x * w).astype(o_ref.dtype)
    else:
        # Weight is a full packed-sublane tile; view x as (groups, sub, W) so the
        # multiply is a leading-dim broadcast (weight vregs reused, no strided
        # sublane-broadcast load per tile).
        g = tm // ws
        y = x.reshape(g, ws, lane_w) * w.reshape(1, ws, lane_w)
        o_ref[...] = y.reshape(tm, lane_w).astype(o_ref.dtype)


def _sublane_multiple(itemsize: int) -> int:
    # Packed sublane count per dtype width (f32 -> 8, bf16 -> 16, int8/fp8 -> 32).
    return {4: 8, 2: 16, 1: 32}.get(itemsize, 8)


_LANE_TARGET = 512                    # aim for >= 512 lanes per slab row
_LANE_CAP = 2048                      # keep W modest: weight in few vregs, big row tiles
_TILE_TARGET_BYTES = 4 * 1024 * 1024  # ~4 MiB blocks -> large contiguous DMAs


def _choose_layout(M: int, F: int):
    """Pick a lane-dense slab (rows, W) with W % 128 == 0 whenever it is cheap.

    Returns (rows, W, k, M_pad): W = k * F and M_pad = rows * k >= M (zero-row
    padding when k does not divide M).  k == 1 keeps the direct (M, F) layout.
    """
    if F % 128 == 0:
        return M, F, 1, M
    k0 = 128 // math.gcd(F, 128)      # smallest k with (k * F) % 128 == 0
    if F >= 128 and k0 * F > _LANE_CAP:
        # Row already spans >= 1 full lane tile; tail-lane masking wastes < 128/F.
        return M, F, 1, M
    k = k0
    while k * F < _LANE_TARGET and (k + k0) * F <= max(_LANE_CAP, k0 * F):
        k += k0
    M_pad = ((M + k - 1) // k) * k
    return M_pad // k, k * F, k, M_pad


def dot_product2(x: jax.Array, weight: jax.Array) -> jax.Array:
    """output = x * weight, weight broadcast along the last dim of x."""
    orig_shape = x.shape
    F = orig_shape[-1]
    assert weight.shape == (F,), f"weight shape {weight.shape} != ({F},)"

    itemsize = jnp.dtype(x.dtype).itemsize
    M = 1
    for d in orig_shape[:-1]:
        M *= d
    if M == 0 or F == 0:
        return x * weight.astype(x.dtype)

    rows, W, k, M_pad = _choose_layout(M, F)

    x2d = x.reshape(M, F)
    if M_pad != M:
        # A few zero rows so the lane-dense slab is exact; sliced off after the
        # kernel.  Lane-dense (unmasked) stores >> the cost of the pad.
        x2d = jnp.pad(x2d, ((0, M_pad - M), (0, 0)))
    x_slab = x2d.reshape(rows, W)

    row_bytes = W * itemsize
    sub = _sublane_multiple(itemsize)

    # Row-tile size: ~4 MiB blocks, multiple of the packed sublane count.
    tm_cap = max(sub, min(4096, (_TILE_TARGET_BYTES // row_bytes) // sub * sub))

    if rows < 2 * sub:
        tm = rows                      # single block == full array dims (legal)
        grid = (1,)
    else:
        total_bytes = rows * row_bytes
        # >= 2 blocks so the "parallel" axis shards across both v7x TensorCores;
        # >= 4 blocks on big arrays so prefetch/compute/writeback fully overlap.
        min_blocks = 4 if total_bytes >= 4 * _TILE_TARGET_BYTES else 2
        nblocks = max(pl.cdiv(rows, tm_cap), min_blocks)
        tm = min(tm_cap, pl.cdiv(pl.cdiv(rows, nblocks), sub) * sub)
        grid = (pl.cdiv(rows, tm),)    # ragged last block handled by Pallas

    # Weight operand: a full packed-sublane tile when the x tile is an exact
    # multiple of it; otherwise the plain (1, W)/(tm, W) row.
    if tm > sub and tm % sub == 0 and W % 128 == 0:
        ws = sub
    else:
        ws = tm if tm <= sub else 1

    w_row = jnp.tile(weight.astype(x.dtype), k)            # (W,)
    w_tile = jnp.broadcast_to(w_row[None, :], (ws, W))     # (ws, W)

    tile_bytes = tm * row_bytes
    w_bytes = ws * row_bytes
    # Explicit scoped-VMEM limit: double-buffered in/out tiles + weight buffers
    # + one tile of slack for any broadcast intermediate + headroom.  Explicitly
    # raising it keeps big tiles working on v5e (16 MiB default scoped limit)
    # while staying far below v7x's 64 MiB physical VMEM.
    vmem_limit = 4 * tile_bytes + 2 * w_bytes + tile_bytes + 4 * 1024 * 1024
    vmem_limit = int(min(max(vmem_limit, 16 * 1024 * 1024), 48 * 1024 * 1024))

    n_elems = rows * W
    cost = pl.CostEstimate(
        flops=n_elems,
        transcendentals=0,
        bytes_accessed=2 * n_elems * itemsize + w_bytes,
    )

    out = pl.pallas_call(
        _dot_product2_kernel,
        out_shape=jax.ShapeDtypeStruct((rows, W), x.dtype),
        grid_spec=pltpu.PrefetchScalarGridSpec(
            num_scalar_prefetch=0,
            grid=grid,
            in_specs=[
                pl.BlockSpec((tm, W), lambda i: (i, 0)),   # input row-tile
                pl.BlockSpec((ws, W), lambda i: (0, 0)),   # weight tile, resident
            ],
            out_specs=pl.BlockSpec((tm, W), lambda i: (i, 0)),
        ),
        compiler_params=pltpu.CompilerParams(
            dimension_semantics=("parallel",),
            vmem_limit_bytes=vmem_limit,
        ),
        cost_estimate=cost,
    )(x_slab, w_tile)

    out2d = out.reshape(M_pad, F)
    if M_pad != M:
        out2d = out2d[:M]
    return out2d.reshape(orig_shape)


def init_dot_product2_weight(key: jax.Array, in_features: int) -> jax.Array:
    """Matches PyTorch reset_parameters: uniform(-stdv, stdv), stdv = 1/sqrt(F)."""
    stdv = 1.0 / math.sqrt(in_features)
    return jax.random.uniform(
        key, (in_features,), dtype=jnp.float32, minval=-stdv, maxval=stdv
    )


if __name__ == "__main__":
    key = jax.random.PRNGKey(0)
    k_x, k_w, k_x2, k_w2, k_x3, k_w3, k_x4, k_w4 = jax.random.split(key, 8)

    # 1) Small case from the module spec (lane-dense replication: F=32 -> W=512).
    batch, seq, in_features = 2, 8, 32
    x = jax.random.normal(k_x, (batch, seq, in_features), dtype=jnp.float32)
    w = init_dot_product2_weight(k_w, in_features)
    out = jax.block_until_ready(dot_product2(x, w))
    assert out.shape == x.shape and out.dtype == x.dtype
    assert jnp.allclose(out, x * w[None, None, :], atol=1e-6, rtol=1e-6)

    # 2) Multi-block path (F % 128 == 0), >= 4 grid steps, (8, W) weight tile.
    F2 = 256
    x2 = jax.random.normal(k_x2, (64, 33, F2), dtype=jnp.float32)
    w2 = init_dot_product2_weight(k_w2, F2)
    out2 = jax.block_until_ready(dot_product2(x2, w2))
    assert jnp.allclose(out2, x2 * w2[None, None, :], atol=1e-6, rtol=1e-6)

    # 3) Replication factor does not divide the row count -> zero-row padding path.
    F3 = 48
    x3 = jax.random.normal(k_x3, (3, 5, F3), dtype=jnp.float32)
    w3 = init_dot_product2_weight(k_w3, F3)
    out3 = jax.block_until_ready(dot_product2(x3, w3))
    assert jnp.allclose(out3, x3 * w3[None, None, :], atol=1e-6, rtol=1e-6)

    # 4) bf16, multi-block (>= 2 blocks) with a (16, W) packed-sublane weight tile.
    F4 = 128
    x4 = jax.random.normal(k_x4, (2, 64, F4), dtype=jnp.float32).astype(jnp.bfloat16)
    w4 = init_dot_product2_weight(k_w4, F4).astype(jnp.bfloat16)
    out4 = jax.block_until_ready(dot_product2(x4, w4))
    ref4 = x4 * w4[None, None, :]
    assert jnp.allclose(out4.astype(jnp.float32), ref4.astype(jnp.float32),
                        atol=1e-2, rtol=1e-2)

    print("KERNEL_OK")
</pallas_src>

<mosaic_0001>
module attributes {stable_mosaic.version = 11 : i64} {
  func.func @_dot_product2_kernel(%arg0: i32, %arg1: memref<1x512xf32, #tpu.memory_space<vmem>>, %arg2: memref<1x512xf32, #tpu.memory_space<vmem>>, %arg3: memref<1x512xf32, #tpu.memory_space<vmem>>) attributes {dimension_semantics = [#tpu.dimension_semantics<parallel>], iteration_bounds = array<i64: 1>, scalar_prefetch = 0 : i64, scratch_operands = 0 : i64, tpu.core_type = #tpu.core_type<tc>, window_params = [{transform_indices = @transform_0, window_bounds = array<i64: 1, 512>}, {pipeline_mode = #tpu.pipeline_mode<synchronous>, transform_indices = @transform_1, window_bounds = array<i64: 1, 512>}, {transform_indices = @transform_2, window_bounds = array<i64: 1, 512>}]} {
    %c0 = arith.constant 0 : index
    %c0_0 = arith.constant 0 : index
    %0 = vector.load %arg1[%c0, %c0_0] : memref<1x512xf32, #tpu.memory_space<vmem>>, vector<1x512xf32>
    %c0_1 = arith.constant 0 : index
    %c0_2 = arith.constant 0 : index
    %1 = vector.load %arg2[%c0_1, %c0_2] : memref<1x512xf32, #tpu.memory_space<vmem>>, vector<1x512xf32>
    %2 = arith.mulf %0, %1 : vector<1x512xf32>
    %c0_3 = arith.constant 0 : index
    %c0_4 = arith.constant 0 : index
    %3 = vector.load %arg3[%c0_3, %c0_4] : memref<1x512xf32, #tpu.memory_space<vmem>>, vector<1x512xf32>
    tpu.vector_store %arg3[%c0_3, %c0_4], %2 {strides = array<i32>} : memref<1x512xf32, #tpu.memory_space<vmem>>, vector<1x512xf32>,
    return
  }
  func.func @transform_0(%arg0: i32) -> (i32, i32) {
    %c0_i32 = arith.constant 0 : i32
    %c0_i32_0 = arith.constant 0 : i32
    return %arg0, %c0_i32 : i32, i32
  }
  func.func @transform_1(%arg0: i32) -> (i32, i32) {
    %c0_i32 = arith.constant 0 : i32
    %c0_i32_0 = arith.constant 0 : i32
    %c0_i32_1 = arith.constant 0 : i32
    return %c0_i32, %c0_i32_0 : i32, i32
  }
  func.func @transform_2(%arg0: i32) -> (i32, i32) {
    %c0_i32 = arith.constant 0 : i32
    %c0_i32_0 = arith.constant 0 : i32
    return %arg0, %c0_i32 : i32, i32
  }
}

</mosaic_0001>

<llo_original>
// kernel: tpu_custom_call.1
$region0: #{tpu_custom_call.1}
  #allocation0 [shape = 'u32[]', space=smem, size = 0x4, offset = 0x4, fixed_abs, tag = 'smem constant byte address 0x4 - core index']
  #allocation1 [shape = 'u32[144,128]{1,0:T(1,128)}', space=vmem, size = 0x12000, scoped, tag = 'internal scratch']
  %s0 = inlined_call_operand.hbm [shape: f32[1,512], index: 0, kind: input, shape index: {}]
  %s1 = inlined_call_operand.hbm [shape: f32[1,512], index: 1, kind: input, shape index: {}]
  %s2 = inlined_call_operand.hbm [shape: f32[1,512], index: 2, kind: output, shape index: {}]
  %s3 = sld [smem:[#allocation0]]
  $region26: #{tpu_custom_call.1} parent=0
    _
  %s5 = ssub.s32 1, %s3
  %s6 = scalar_select 0, %s5, %s3
  $region1: #{tpu_custom_call.1} parent=0
    #allocation2 [shape = 'u8[2048]{0}', space=vmem, size = 0x800, scoped, tag = 'input window, operand 0, single buffered']
    #allocation3 [shape = 's32[1]{0}', space=sflag, size = 0x4, scoped, tag = 'scoped memory for tpu_custom_call.1']
    #allocation4 [shape = 's32[1]{0}', space=sflag, size = 0x4, scoped, tag = 'scoped memory for tpu_custom_call.1']
    #allocation5 [shape = 'u8[2048]{0}', space=vmem, size = 0x800, scoped, tag = 'input window, operand 1, single buffered']
    #allocation6 [shape = 's32[1]{0}', space=sflag, size = 0x4, scoped, tag = 'scoped memory for tpu_custom_call.1']
    #allocation7 [shape = 'u8[2048]{0}', space=vmem, size = 0x800, scoped, tag = 'output window, operand 0, single buffered']
    %7 = vsyncpa [#allocation3], 0
    %8 = vsyncpa [#allocation6], 0
    %9 = vsyncpa [#allocation4], 0
    // Predicated region
    $region2: #{tpu_custom_call.1} parent=1 // pred_check
      _
    $region3: #{tpu_custom_call.1} parent=1 // pred_check_branch
      %11 = sbr.rel (0) target = $region5
    $region4: #{tpu_custom_call.1} parent=1 // pred_region
      %s13 = ssub.s32 64, 64
      %14 = vsyncadd [#allocation3], %s13
      %s16 = sshll.u32 [#allocation2], 4
      %s17 = int_to_ptr.vmem [resolvable:$true] %s16
      %19 = dma.hbm_to_vmem [thread:$0]  %s0, 64, %s17, [#allocation3]
    $region5: #{tpu_custom_call.1} parent=1 // pred_fallthru
      _
    // Predicated region
    $region6: #{tpu_custom_call.1} parent=1 // pred_check
      _
    $region7: #{tpu_custom_call.1} parent=1 // pred_check_branch
      %21 = sbr.rel (0) target = $region9
    $region8: #{tpu_custom_call.1} parent=1 // pred_region
      %s23 = ssub.s32 64, 64
      %24 = vsyncadd [#allocation6], %s23
      %s26 = sshll.u32 [#allocation5], 4
      %s27 = int_to_ptr.vmem [resolvable:$true] %s26
      %29 = dma.hbm_to_vmem [thread:$0]  %s1, 64, %s27, [#allocation6]
    $region9: #{tpu_custom_call.1} parent=1 // pred_fallthru
      _
    // Predicated region
    $region10: #{tpu_custom_call.1} parent=1 // pred_check
      _
    $region11: #{tpu_custom_call.1} parent=1 // pred_check_branch
      %31 = sbr.rel (0) target = $region13
    $region12: #{tpu_custom_call.1} parent=1 // pred_region
      %32 = dma.done [#allocation3], 64
    $region13: #{tpu_custom_call.1} parent=1 // pred_fallthru
      _
    // Predicated region
    $region14: #{tpu_custom_call.1} parent=1 // pred_check
      _
    $region15: #{tpu_custom_call.1} parent=1 // pred_check_branch
      %34 = sbr.rel (0) target = $region17
    $region16: #{tpu_custom_call.1} parent=1 // pred_region
      %35 = dma.done [#allocation6], 64
    $region17: #{tpu_custom_call.1} parent=1 // pred_fallthru
      _
    %v36 = vld [vmem:[#allocation2] sm:$0xf]
    %v37 = vld [vmem:[#allocation5] sm:$0xf]
    %v38 = vmul.f32 %v36, %v37
    %v39 = vlaneseq
    %vm40 = vcmp.ge.s32.totalorder %v39, 0
    %vm41 = vcmp.lt.s32.totalorder %v39, 512
    %vm42 = vmand %vm40, %vm41
    %43 = vst.msk [vmem:[#allocation7] sm:$0xf] %vm42, %v38
    // Predicated region
    $region18: #{tpu_custom_call.1} parent=1 // pred_check
      _
    $region19: #{tpu_custom_call.1} parent=1 // pred_check_branch
      %45 = sbr.rel (0) target = $region21
    $region20: #{tpu_custom_call.1} parent=1 // pred_region
      %s47 = ssub.s32 64, 64
      %48 = vsyncadd [#allocation4], %s47
      %s50 = sshll.u32 [#allocation7], 4
      %s51 = int_to_ptr.vmem [resolvable:$true] %s50
      %53 = dma.vmem_to_hbm [thread:$0]  %s51, 64, %s2, [#allocation4]
    $region21: #{tpu_custom_call.1} parent=1 // pred_fallthru
      _
    // Predicated region
    $region22: #{tpu_custom_call.1} parent=1 // pred_check
      _
    $region23: #{tpu_custom_call.1} parent=1 // pred_check_branch
      %55 = sbr.rel (0) target = $region25
    $region24: #{tpu_custom_call.1} parent=1 // pred_region
      %56 = dma.done [#allocation4], 64
    $region25: #{tpu_custom_call.1} parent=1 // pred_fallthru
      _
    %57 = vsyncpa [#allocation3], 1
    %58 = vsyncpa [#allocation6], 1
    %59 = vsyncpa [#allocation4], 1

</llo_original>
